<compile_context>
chip_gen: v7x
topology: tpu7x:2x2x1
jax: 0.10.0
libtpu: 0.0.40
codegen_flags: <defaults>
</compile_context>

<pallas_src>
import functools
import math

import jax
import jax.numpy as jnp
from jax.experimental import pallas as pl
from jax.experimental.pallas import tpu as pltpu

_NUM_CH = 12          # packed channels (see header comment)
_LANES = 128
_MAX_TILE_ROWS = 512  # 12 * 512 * 128 * 4 B = 3 MiB per block


def _consistency_kernel(aug_ref, x_ref, out_ref, acc_ref, *,
                        aug_type, n_real, loss_weight):
    eps = 1e-7
    pid = pl.program_id(0)

    @pl.when(pid == 0)
    def _init():
        acc_ref[0] = jnp.float32(0.0)   # sum of gwd loss (valid rows)
        acc_ref[1] = jnp.float32(0.0)   # sum of smooth-l1 * keep
        acc_ref[2] = jnp.float32(0.0)   # sum of keep (count)

    av = aug_ref[0]  # scalar aug_val (rotation angle or scale) from SMEM

    # Dense (tile_rows, 128) operands.
    a, b, c, d = x_ref[0], x_ref[1], x_ref[2], x_ref[3]          # ori Sigma
    ta, tb, tc, td = x_ref[4], x_ref[5], x_ref[6], x_ref[7]      # trs Sigma
    oa, tra = x_ref[8], x_ref[9]                                 # angles
    keep, valid = x_ref[10], x_ref[11]                           # masks

    # ---- augmentation-dependent transform (aug_type is static) ----
    if aug_type == 'rot':
        cr = jnp.cos(av)
        sr = jnp.sin(av)
        # M = R @ G with R = [[c,-s],[s,c]];  G' = M @ R^T
        m00 = cr * a - sr * c
        m01 = cr * b - sr * d
        m10 = sr * a + cr * c
        m11 = sr * b + cr * d
        g00 = m00 * cr - m01 * sr
        g01 = m00 * sr + m01 * cr
        g10 = m10 * cr - m11 * sr
        g11 = m10 * sr + m11 * cr
        d_ang = tra - oa - av
    elif aug_type == 'flp':
        g00, g01, g10, g11 = a, -b, -c, d
        d_ang = tra + oa
    else:  # 'sca'
        g00, g01, g10, g11 = a * av, b * av, c * av, d * av
        d_ang = tra - oa

    # ---- Sigma_p = G'@G', Sigma_t = T@T (per-sample 2x2, VPU elementwise) ----
    p00 = g00 * g00 + g01 * g10
    p01 = g00 * g01 + g01 * g11
    p10 = g10 * g00 + g11 * g10
    p11 = g10 * g01 + g11 * g11

    t00 = ta * ta + tb * tc
    t01 = ta * tb + tb * td
    t10 = tc * ta + td * tc
    t11 = tc * tb + td * td

    # ---- gwd_sigma_loss (fun='log1p', tau=1.0, alpha=1.0, normalize=True) ----
    whr = p00 + p11 + t00 + t11
    t_tr = p00 * t00 + p01 * t10 + p10 * t01 + p11 * t11
    det_p = p00 * p11 - p01 * p10
    det_t = t00 * t11 - t01 * t10
    t_det_sqrt = jnp.sqrt(jnp.maximum(det_p * det_t, eps))
    whr = whr - 2.0 * jnp.sqrt(jnp.maximum(t_tr + 2.0 * t_det_sqrt, eps))
    distance = jnp.sqrt(jnp.maximum(whr, eps))  # alpha == 1
    scale = 2.0 * jnp.maximum(
        jnp.sqrt(jnp.maximum(jnp.sqrt(jnp.maximum(t_det_sqrt, eps)), eps)), eps)
    distance = distance * pl.reciprocal(scale, approx=True)
    # postprocess: log1p then (tau >= 1): 1 - 1/(tau + distance)
    loss_g = 1.0 - pl.reciprocal(1.0 + jnp.log1p(distance), approx=True)

    # ---- angle consistency: wrap to [-pi/2, pi/2), smooth-L1 (beta=0.1) ----
    half_pi = math.pi / 2.0
    inv_pi = 1.0 / math.pi
    xw = d_ang + half_pi
    xw = xw - jnp.floor(xw * inv_pi) * math.pi   # torch-style float % pi
    d_ang = xw - half_pi
    beta = 0.1
    abs_d = jnp.abs(d_ang)
    sl1 = jnp.where(abs_d < beta, (0.5 / beta) * abs_d * abs_d,
                    abs_d - 0.5 * beta)

    # ---- per-block partial sums into SMEM accumulators ----
    acc_ref[0] += jnp.sum(loss_g * valid)
    acc_ref[1] += jnp.sum(sl1 * keep)
    acc_ref[2] += jnp.sum(keep)

    @pl.when(pid == pl.num_programs(0) - 1)
    def _finalize():
        loss_ssg = acc_ref[0] / n_real                     # mean over real boxes
        cnt = jnp.maximum(acc_ref[2], 1.0)                 # max(1, (~mask).sum())
        loss_ssa = acc_ref[1] / cnt
        out_ref[0] = loss_weight * (loss_ssg + loss_ssa)


def point2rbox_v2_consistency_loss(ori_pred, trs_pred, square_mask, aug_type,
                                   aug_val, loss_weight=1.0):
    """JAX/Pallas equivalent of Point2RBoxV2ConsistencyLoss.forward.

    ori_pred / trs_pred: tuples of (Sigma (N,2,2) f32, angle (N,) f32)
    square_mask: (N,) bool
    aug_type: 'rot' | 'flp' | 'sca' (static python string)
    aug_val: rotation angle or scale (python float or 0-d array)
    """
    ori_gaus, ori_angle = ori_pred
    trs_gaus, trs_angle = trs_pred
    n = ori_gaus.shape[0]

    og = ori_gaus.reshape(n, 4).astype(jnp.float32)
    tg = trs_gaus.reshape(n, 4).astype(jnp.float32)
    oa = ori_angle.reshape(n).astype(jnp.float32)
    tra = trs_angle.reshape(n).astype(jnp.float32)
    keep = jnp.logical_not(square_mask).reshape(n).astype(jnp.float32)
    valid = jnp.ones((n,), jnp.float32)

    # Single packing pass -> (12, N) component-major stacked tensor.
    x = jnp.stack([og[:, 0], og[:, 1], og[:, 2], og[:, 3],
                   tg[:, 0], tg[:, 1], tg[:, 2], tg[:, 3],
                   oa, tra, keep, valid], axis=0)

    # Dense (rows, 128) batch layout, rows a multiple of 8 (sublanes) and of
    # the tile size when the grid has more than one step.
    n_rows = -(-n // _LANES)
    n_rows = -(-n_rows // 8) * 8
    if n_rows <= _MAX_TILE_ROWS:
        tile_rows = n_rows
    else:
        tile_rows = _MAX_TILE_ROWS
        n_rows = -(-n_rows // tile_rows) * tile_rows
    n_pad = n_rows * _LANES
    if n_pad > n:
        x = jnp.pad(x, ((0, 0), (0, n_pad - n)))   # pads keep/valid with 0
    x = x.reshape(_NUM_CH, n_rows, _LANES)
    num_blocks = n_rows // tile_rows

    aug = jnp.asarray([aug_val], dtype=jnp.float32)

    kernel = functools.partial(
        _consistency_kernel,
        aug_type=aug_type,
        n_real=float(n),
        loss_weight=float(loss_weight),
    )

    out = pl.pallas_call(
        kernel,
        out_shape=jax.ShapeDtypeStruct((1,), jnp.float32),
        grid_spec=pltpu.PrefetchScalarGridSpec(
            num_scalar_prefetch=0,
            grid=(num_blocks,),
            in_specs=[
                pl.BlockSpec(memory_space=pltpu.MemorySpace.SMEM),  # aug_val
                pl.BlockSpec((_NUM_CH, tile_rows, _LANES),
                             lambda i: (0, i, 0)),                  # packed data
            ],
            out_specs=pl.BlockSpec(memory_space=pltpu.MemorySpace.SMEM),
            scratch_shapes=[pltpu.SMEM((3,), jnp.float32)],
        ),
        compiler_params=pltpu.CompilerParams(
            dimension_semantics=("arbitrary",),
            vmem_limit_bytes=32 * 1024 * 1024,
        ),
    )(aug, x)
    return out[0]


def _make_sigma(key, n):
    """Random symmetric PSD 2x2 covariance matrices, shape (n, 2, 2)."""
    a = jax.random.uniform(key, (n, 2, 2), minval=-2.0, maxval=2.0)
    return jnp.einsum('nij,nkj->nik', a, a) + 0.5 * jnp.eye(2)[None]


if __name__ == "__main__":
    key = jax.random.PRNGKey(0)
    k1, k2, k3, k4, k5 = jax.random.split(key, 5)

    # Small case (single-block grid), matches the module's natural input shapes.
    N = 8
    ori_gaus = _make_sigma(k1, N)                                        # (N,2,2)
    trs_gaus = _make_sigma(k2, N)                                        # (N,2,2)
    ori_angle = jax.random.uniform(k3, (N,), minval=-1.5, maxval=1.5)    # (N,)
    trs_angle = jax.random.uniform(k4, (N,), minval=-1.5, maxval=1.5)    # (N,)
    square_mask = jax.random.bernoulli(k5, 0.3, (N,))                    # (N,) bool

    loss_rot = point2rbox_v2_consistency_loss(
        (ori_gaus, ori_angle), (trs_gaus, trs_angle),
        square_mask, 'rot', 0.3, loss_weight=1.0)
    loss_flp = point2rbox_v2_consistency_loss(
        (ori_gaus, ori_angle), (trs_gaus, trs_angle),
        square_mask, 'flp', 0.0, loss_weight=1.0)
    loss_sca = point2rbox_v2_consistency_loss(
        (ori_gaus, ori_angle), (trs_gaus, trs_angle),
        square_mask, 'sca', 1.2, loss_weight=1.0)

    # Larger case to exercise the multi-block reduction grid / accumulators.
    N2 = 70000
    kk = jax.random.split(jax.random.PRNGKey(1), 5)
    big_loss = point2rbox_v2_consistency_loss(
        (_make_sigma(kk[0], N2),
         jax.random.uniform(kk[2], (N2,), minval=-1.5, maxval=1.5)),
        (_make_sigma(kk[1], N2),
         jax.random.uniform(kk[3], (N2,), minval=-1.5, maxval=1.5)),
        jax.random.bernoulli(kk[4], 0.3, (N2,)),
        'sca', 0.7, loss_weight=1.0)

    jax.block_until_ready((loss_rot, loss_flp, loss_sca, big_loss))
    print("KERNEL_OK")
</pallas_src>

<mosaic_0001>
module attributes {stable_mosaic.version = 11 : i64} {
  func.func @_consistency_kernel(%arg0: i32, %arg1: memref<1xf32, #tpu.memory_space<smem>>, %arg2: memref<12x8x128xf32, #tpu.memory_space<vmem>>, %arg3: memref<1xf32, #tpu.memory_space<smem>>, %arg4: memref<3xf32, #tpu.memory_space<smem>>) attributes {dimension_semantics = [#tpu.dimension_semantics<arbitrary>], iteration_bounds = array<i64: 1>, scalar_prefetch = 0 : i64, scratch_operands = 1 : i64, tpu.core_type = #tpu.core_type<tc>, window_params = [{transform_indices = @transform_0, window_bounds = array<i64: 1>}, {transform_indices = @transform_1, window_bounds = array<i64: 12, 8, 128>}, {transform_indices = @transform_2, window_bounds = array<i64: 1>}]} {
    %c0_i32 = arith.constant 0 : i32
    %0 = arith.cmpi eq, %arg0, %c0_i32 : i32
    %1 = arith.extui %0 : i1 to i32
    %c0_i32_0 = arith.constant 0 : i32
    %2 = arith.cmpi ne, %1, %c0_i32_0 : i32
    scf.if %2 {
      %cst_54 = arith.constant 0.000000e+00 : f32
      %c0_55 = arith.constant 0 : index
      %192 = memref.load %arg4[%c0_55] : memref<3xf32, #tpu.memory_space<smem>>
      memref.store %cst_54, %arg4[%c0_55] : memref<3xf32, #tpu.memory_space<smem>>
      %cst_56 = arith.constant 0.000000e+00 : f32
      %c1_57 = arith.constant 1 : index
      %193 = memref.load %arg4[%c1_57] : memref<3xf32, #tpu.memory_space<smem>>
      memref.store %cst_56, %arg4[%c1_57] : memref<3xf32, #tpu.memory_space<smem>>
      %cst_58 = arith.constant 0.000000e+00 : f32
      %c2_59 = arith.constant 2 : index
      %194 = memref.load %arg4[%c2_59] : memref<3xf32, #tpu.memory_space<smem>>
      memref.store %cst_58, %arg4[%c2_59] : memref<3xf32, #tpu.memory_space<smem>>
    } else {
    }
    %c0 = arith.constant 0 : index
    %3 = memref.load %arg1[%c0] : memref<1xf32, #tpu.memory_space<smem>>
    %c0_1 = arith.constant 0 : index
    %c0_2 = arith.constant 0 : index
    %c0_3 = arith.constant 0 : index
    %4 = vector.load %arg2[%c0_1, %c0_2, %c0_3] : memref<12x8x128xf32, #tpu.memory_space<vmem>>, vector<1x8x128xf32>
    %5 = vector.shape_cast %4 : vector<1x8x128xf32> to vector<8x128xf32>
    %c1 = arith.constant 1 : index
    %c0_4 = arith.constant 0 : index
    %c0_5 = arith.constant 0 : index
    %6 = vector.load %arg2[%c1, %c0_4, %c0_5] : memref<12x8x128xf32, #tpu.memory_space<vmem>>, vector<1x8x128xf32>
    %7 = vector.shape_cast %6 : vector<1x8x128xf32> to vector<8x128xf32>
    %c2 = arith.constant 2 : index
    %c0_6 = arith.constant 0 : index
    %c0_7 = arith.constant 0 : index
    %8 = vector.load %arg2[%c2, %c0_6, %c0_7] : memref<12x8x128xf32, #tpu.memory_space<vmem>>, vector<1x8x128xf32>
    %9 = vector.shape_cast %8 : vector<1x8x128xf32> to vector<8x128xf32>
    %c3 = arith.constant 3 : index
    %c0_8 = arith.constant 0 : index
    %c0_9 = arith.constant 0 : index
    %10 = vector.load %arg2[%c3, %c0_8, %c0_9] : memref<12x8x128xf32, #tpu.memory_space<vmem>>, vector<1x8x128xf32>
    %11 = vector.shape_cast %10 : vector<1x8x128xf32> to vector<8x128xf32>
    %c4 = arith.constant 4 : index
    %c0_10 = arith.constant 0 : index
    %c0_11 = arith.constant 0 : index
    %12 = vector.load %arg2[%c4, %c0_10, %c0_11] : memref<12x8x128xf32, #tpu.memory_space<vmem>>, vector<1x8x128xf32>
    %13 = vector.shape_cast %12 : vector<1x8x128xf32> to vector<8x128xf32>
    %c5 = arith.constant 5 : index
    %c0_12 = arith.constant 0 : index
    %c0_13 = arith.constant 0 : index
    %14 = vector.load %arg2[%c5, %c0_12, %c0_13] : memref<12x8x128xf32, #tpu.memory_space<vmem>>, vector<1x8x128xf32>
    %15 = vector.shape_cast %14 : vector<1x8x128xf32> to vector<8x128xf32>
    %c6 = arith.constant 6 : index
    %c0_14 = arith.constant 0 : index
    %c0_15 = arith.constant 0 : index
    %16 = vector.load %arg2[%c6, %c0_14, %c0_15] : memref<12x8x128xf32, #tpu.memory_space<vmem>>, vector<1x8x128xf32>
    %17 = vector.shape_cast %16 : vector<1x8x128xf32> to vector<8x128xf32>
    %c7 = arith.constant 7 : index
    %c0_16 = arith.constant 0 : index
    %c0_17 = arith.constant 0 : index
    %18 = vector.load %arg2[%c7, %c0_16, %c0_17] : memref<12x8x128xf32, #tpu.memory_space<vmem>>, vector<1x8x128xf32>
    %19 = vector.shape_cast %18 : vector<1x8x128xf32> to vector<8x128xf32>
    %c8 = arith.constant 8 : index
    %c0_18 = arith.constant 0 : index
    %c0_19 = arith.constant 0 : index
    %20 = vector.load %arg2[%c8, %c0_18, %c0_19] : memref<12x8x128xf32, #tpu.memory_space<vmem>>, vector<1x8x128xf32>
    %21 = vector.shape_cast %20 : vector<1x8x128xf32> to vector<8x128xf32>
    %c9 = arith.constant 9 : index
    %c0_20 = arith.constant 0 : index
    %c0_21 = arith.constant 0 : index
    %22 = vector.load %arg2[%c9, %c0_20, %c0_21] : memref<12x8x128xf32, #tpu.memory_space<vmem>>, vector<1x8x128xf32>
    %23 = vector.shape_cast %22 : vector<1x8x128xf32> to vector<8x128xf32>
    %c10 = arith.constant 10 : index
    %c0_22 = arith.constant 0 : index
    %c0_23 = arith.constant 0 : index
    %24 = vector.load %arg2[%c10, %c0_22, %c0_23] : memref<12x8x128xf32, #tpu.memory_space<vmem>>, vector<1x8x128xf32>
    %25 = vector.shape_cast %24 : vector<1x8x128xf32> to vector<8x128xf32>
    %c11 = arith.constant 11 : index
    %c0_24 = arith.constant 0 : index
    %c0_25 = arith.constant 0 : index
    %26 = vector.load %arg2[%c11, %c0_24, %c0_25] : memref<12x8x128xf32, #tpu.memory_space<vmem>>, vector<1x8x128xf32>
    %27 = vector.shape_cast %26 : vector<1x8x128xf32> to vector<8x128xf32>
    %28 = math.cos %3 : f32
    %29 = math.sin %3 : f32
    %30 = vector.broadcast %28 : f32 to vector<8x128xf32>
    %31 = arith.mulf %30, %5 : vector<8x128xf32>
    %32 = vector.broadcast %29 : f32 to vector<8x128xf32>
    %33 = arith.mulf %32, %9 : vector<8x128xf32>
    %34 = arith.subf %31, %33 : vector<8x128xf32>
    %35 = vector.broadcast %28 : f32 to vector<8x128xf32>
    %36 = arith.mulf %35, %7 : vector<8x128xf32>
    %37 = vector.broadcast %29 : f32 to vector<8x128xf32>
    %38 = arith.mulf %37, %11 : vector<8x128xf32>
    %39 = arith.subf %36, %38 : vector<8x128xf32>
    %40 = vector.broadcast %29 : f32 to vector<8x128xf32>
    %41 = arith.mulf %40, %5 : vector<8x128xf32>
    %42 = vector.broadcast %28 : f32 to vector<8x128xf32>
    %43 = arith.mulf %42, %9 : vector<8x128xf32>
    %44 = arith.addf %41, %43 : vector<8x128xf32>
    %45 = vector.broadcast %29 : f32 to vector<8x128xf32>
    %46 = arith.mulf %45, %7 : vector<8x128xf32>
    %47 = vector.broadcast %28 : f32 to vector<8x128xf32>
    %48 = arith.mulf %47, %11 : vector<8x128xf32>
    %49 = arith.addf %46, %48 : vector<8x128xf32>
    %50 = vector.broadcast %28 : f32 to vector<8x128xf32>
    %51 = arith.mulf %34, %50 : vector<8x128xf32>
    %52 = vector.broadcast %29 : f32 to vector<8x128xf32>
    %53 = arith.mulf %39, %52 : vector<8x128xf32>
    %54 = arith.subf %51, %53 : vector<8x128xf32>
    %55 = vector.broadcast %29 : f32 to vector<8x128xf32>
    %56 = arith.mulf %34, %55 : vector<8x128xf32>
    %57 = vector.broadcast %28 : f32 to vector<8x128xf32>
    %58 = arith.mulf %39, %57 : vector<8x128xf32>
    %59 = arith.addf %56, %58 : vector<8x128xf32>
    %60 = vector.broadcast %28 : f32 to vector<8x128xf32>
    %61 = arith.mulf %44, %60 : vector<8x128xf32>
    %62 = vector.broadcast %29 : f32 to vector<8x128xf32>
    %63 = arith.mulf %49, %62 : vector<8x128xf32>
    %64 = arith.subf %61, %63 : vector<8x128xf32>
    %65 = vector.broadcast %29 : f32 to vector<8x128xf32>
    %66 = arith.mulf %44, %65 : vector<8x128xf32>
    %67 = vector.broadcast %28 : f32 to vector<8x128xf32>
    %68 = arith.mulf %49, %67 : vector<8x128xf32>
    %69 = arith.addf %66, %68 : vector<8x128xf32>
    %70 = arith.subf %23, %21 : vector<8x128xf32>
    %71 = vector.broadcast %3 : f32 to vector<8x128xf32>
    %72 = arith.subf %70, %71 : vector<8x128xf32>
    %73 = arith.mulf %54, %54 : vector<8x128xf32>
    %74 = arith.mulf %59, %64 : vector<8x128xf32>
    %75 = arith.addf %73, %74 : vector<8x128xf32>
    %76 = arith.mulf %54, %59 : vector<8x128xf32>
    %77 = arith.mulf %59, %69 : vector<8x128xf32>
    %78 = arith.addf %76, %77 : vector<8x128xf32>
    %79 = arith.mulf %64, %54 : vector<8x128xf32>
    %80 = arith.mulf %69, %64 : vector<8x128xf32>
    %81 = arith.addf %79, %80 : vector<8x128xf32>
    %82 = arith.mulf %64, %59 : vector<8x128xf32>
    %83 = arith.mulf %69, %69 : vector<8x128xf32>
    %84 = arith.addf %82, %83 : vector<8x128xf32>
    %85 = arith.mulf %13, %13 : vector<8x128xf32>
    %86 = arith.mulf %15, %17 : vector<8x128xf32>
    %87 = arith.addf %85, %86 : vector<8x128xf32>
    %88 = arith.mulf %13, %15 : vector<8x128xf32>
    %89 = arith.mulf %15, %19 : vector<8x128xf32>
    %90 = arith.addf %88, %89 : vector<8x128xf32>
    %91 = arith.mulf %17, %13 : vector<8x128xf32>
    %92 = arith.mulf %19, %17 : vector<8x128xf32>
    %93 = arith.addf %91, %92 : vector<8x128xf32>
    %94 = arith.mulf %17, %15 : vector<8x128xf32>
    %95 = arith.mulf %19, %19 : vector<8x128xf32>
    %96 = arith.addf %94, %95 : vector<8x128xf32>
    %97 = arith.addf %75, %84 : vector<8x128xf32>
    %98 = arith.addf %97, %87 : vector<8x128xf32>
    %99 = arith.addf %98, %96 : vector<8x128xf32>
    %100 = arith.mulf %75, %87 : vector<8x128xf32>
    %101 = arith.mulf %78, %93 : vector<8x128xf32>
    %102 = arith.addf %100, %101 : vector<8x128xf32>
    %103 = arith.mulf %81, %90 : vector<8x128xf32>
    %104 = arith.addf %102, %103 : vector<8x128xf32>
    %105 = arith.mulf %84, %96 : vector<8x128xf32>
    %106 = arith.addf %104, %105 : vector<8x128xf32>
    %107 = arith.mulf %75, %84 : vector<8x128xf32>
    %108 = arith.mulf %78, %81 : vector<8x128xf32>
    %109 = arith.subf %107, %108 : vector<8x128xf32>
    %110 = arith.mulf %87, %96 : vector<8x128xf32>
    %111 = arith.mulf %90, %93 : vector<8x128xf32>
    %112 = arith.subf %110, %111 : vector<8x128xf32>
    %113 = arith.mulf %109, %112 : vector<8x128xf32>
    %cst = arith.constant 1.000000e-07 : f32
    %114 = vector.broadcast %cst : f32 to vector<8x128xf32>
    %115 = arith.maximumf %113, %114 : vector<8x128xf32>
    %116 = math.sqrt %115 : vector<8x128xf32>
    %cst_26 = arith.constant 2.000000e+00 : f32
    %117 = vector.broadcast %cst_26 : f32 to vector<8x128xf32>
    %118 = arith.mulf %117, %116 : vector<8x128xf32>
    %119 = arith.addf %106, %118 : vector<8x128xf32>
    %cst_27 = arith.constant 1.000000e-07 : f32
    %120 = vector.broadcast %cst_27 : f32 to vector<8x128xf32>
    %121 = arith.maximumf %119, %120 : vector<8x128xf32>
    %122 = math.sqrt %121 : vector<8x128xf32>
    %cst_28 = arith.constant 2.000000e+00 : f32
    %123 = vector.broadcast %cst_28 : f32 to vector<8x128xf32>
    %124 = arith.mulf %123, %122 : vector<8x128xf32>
    %125 = arith.subf %99, %124 : vector<8x128xf32>
    %cst_29 = arith.constant 1.000000e-07 : f32
    %126 = vector.broadcast %cst_29 : f32 to vector<8x128xf32>
    %127 = arith.maximumf %125, %126 : vector<8x128xf32>
    %128 = math.sqrt %127 : vector<8x128xf32>
    %cst_30 = arith.constant 1.000000e-07 : f32
    %129 = vector.broadcast %cst_30 : f32 to vector<8x128xf32>
    %130 = arith.maximumf %116, %129 : vector<8x128xf32>
    %131 = math.sqrt %130 : vector<8x128xf32>
    %cst_31 = arith.constant 1.000000e-07 : f32
    %132 = vector.broadcast %cst_31 : f32 to vector<8x128xf32>
    %133 = arith.maximumf %131, %132 : vector<8x128xf32>
    %134 = math.sqrt %133 : vector<8x128xf32>
    %cst_32 = arith.constant 1.000000e-07 : f32
    %135 = vector.broadcast %cst_32 : f32 to vector<8x128xf32>
    %136 = arith.maximumf %134, %135 : vector<8x128xf32>
    %cst_33 = arith.constant 2.000000e+00 : f32
    %137 = vector.broadcast %cst_33 : f32 to vector<8x128xf32>
    %138 = arith.mulf %137, %136 : vector<8x128xf32>
    %139 = tpu.reciprocal %138 {approx = true} : vector<8x128xf32> -> vector<8x128xf32>
    %140 = arith.mulf %128, %139 : vector<8x128xf32>
    %141 = math.log1p %140 : vector<8x128xf32>
    %cst_34 = arith.constant 1.000000e+00 : f32
    %142 = vector.broadcast %cst_34 : f32 to vector<8x128xf32>
    %143 = arith.addf %142, %141 : vector<8x128xf32>
    %144 = tpu.reciprocal %143 {approx = true} : vector<8x128xf32> -> vector<8x128xf32>
    %cst_35 = arith.constant 1.000000e+00 : f32
    %145 = vector.broadcast %cst_35 : f32 to vector<8x128xf32>
    %146 = arith.subf %145, %144 : vector<8x128xf32>
    %cst_36 = arith.constant 1.57079637 : f32
    %147 = vector.broadcast %cst_36 : f32 to vector<8x128xf32>
    %148 = arith.addf %72, %147 : vector<8x128xf32>
    %cst_37 = arith.constant 0.318309873 : f32
    %149 = vector.broadcast %cst_37 : f32 to vector<8x128xf32>
    %150 = arith.mulf %148, %149 : vector<8x128xf32>
    %151 = math.floor %150 : vector<8x128xf32>
    %cst_38 = arith.constant 3.14159274 : f32
    %152 = vector.broadcast %cst_38 : f32 to vector<8x128xf32>
    %153 = arith.mulf %151, %152 : vector<8x128xf32>
    %154 = arith.subf %148, %153 : vector<8x128xf32>
    %cst_39 = arith.constant 1.57079637 : f32
    %155 = vector.broadcast %cst_39 : f32 to vector<8x128xf32>
    %156 = arith.subf %154, %155 : vector<8x128xf32>
    %157 = math.absf %156 : vector<8x128xf32>
    %cst_40 = arith.constant 1.000000e-01 : f32
    %158 = vector.broadcast %cst_40 : f32 to vector<8x128xf32>
    %159 = arith.cmpf olt, %157, %158 : vector<8x128xf32>
    %cst_41 = arith.constant 5.000000e+00 : f32
    %160 = vector.broadcast %cst_41 : f32 to vector<8x128xf32>
    %161 = arith.mulf %160, %157 : vector<8x128xf32>
    %162 = arith.mulf %161, %157 : vector<8x128xf32>
    %cst_42 = arith.constant 5.000000e-02 : f32
    %163 = vector.broadcast %cst_42 : f32 to vector<8x128xf32>
    %164 = arith.subf %157, %163 : vector<8x128xf32>
    %165 = arith.select %159, %162, %164 : vector<8x128xi1>, vector<8x128xf32>
    %c0_43 = arith.constant 0 : index
    %166 = memref.load %arg4[%c0_43] : memref<3xf32, #tpu.memory_space<smem>>
    %167 = arith.mulf %146, %27 : vector<8x128xf32>
    %168 = vector.shape_cast %167 : vector<8x128xf32> to vector<1x8x128xf32>
    %cst_44 = arith.constant dense<0.000000e+00> : vector<1xf32>
    %169 = vector.multi_reduction <add>, %168, %cst_44 [1, 2] : vector<1x8x128xf32> to vector<1xf32>
    %170 = vector.shape_cast %169 : vector<1xf32> to vector<1x1x1xf32>
    %171 = vector.extract %170[0, 0, 0] : f32 from vector<1x1x1xf32>
    %172 = arith.addf %166, %171 : f32
    %c0_45 = arith.constant 0 : index
    %173 = memref.load %arg4[%c0_45] : memref<3xf32, #tpu.memory_space<smem>>
    memref.store %172, %arg4[%c0_45] : memref<3xf32, #tpu.memory_space<smem>>
    %c1_46 = arith.constant 1 : index
    %174 = memref.load %arg4[%c1_46] : memref<3xf32, #tpu.memory_space<smem>>
    %175 = arith.mulf %165, %25 : vector<8x128xf32>
    %176 = vector.shape_cast %175 : vector<8x128xf32> to vector<1x8x128xf32>
    %cst_47 = arith.constant dense<0.000000e+00> : vector<1xf32>
    %177 = vector.multi_reduction <add>, %176, %cst_47 [1, 2] : vector<1x8x128xf32> to vector<1xf32>
    %178 = vector.shape_cast %177 : vector<1xf32> to vector<1x1x1xf32>
    %179 = vector.extract %178[0, 0, 0] : f32 from vector<1x1x1xf32>
    %180 = arith.addf %174, %179 : f32
    %c1_48 = arith.constant 1 : index
    %181 = memref.load %arg4[%c1_48] : memref<3xf32, #tpu.memory_space<smem>>
    memref.store %180, %arg4[%c1_48] : memref<3xf32, #tpu.memory_space<smem>>
    %c2_49 = arith.constant 2 : index
    %182 = memref.load %arg4[%c2_49] : memref<3xf32, #tpu.memory_space<smem>>
    %183 = vector.shape_cast %25 : vector<8x128xf32> to vector<1x8x128xf32>
    %cst_50 = arith.constant dense<0.000000e+00> : vector<1xf32>
    %184 = vector.multi_reduction <add>, %183, %cst_50 [1, 2] : vector<1x8x128xf32> to vector<1xf32>
    %185 = vector.shape_cast %184 : vector<1xf32> to vector<1x1x1xf32>
    %186 = vector.extract %185[0, 0, 0] : f32 from vector<1x1x1xf32>
    %187 = arith.addf %182, %186 : f32
    %c2_51 = arith.constant 2 : index
    %188 = memref.load %arg4[%c2_51] : memref<3xf32, #tpu.memory_space<smem>>
    memref.store %187, %arg4[%c2_51] : memref<3xf32, #tpu.memory_space<smem>>
    %c0_i32_52 = arith.constant 0 : i32
    %189 = arith.cmpi eq, %arg0, %c0_i32_52 : i32
    %190 = arith.extui %189 : i1 to i32
    %c0_i32_53 = arith.constant 0 : i32
    %191 = arith.cmpi ne, %190, %c0_i32_53 : i32
    scf.if %191 {
      %c0_54 = arith.constant 0 : index
      %192 = memref.load %arg4[%c0_54] : memref<3xf32, #tpu.memory_space<smem>>
      %cst_55 = arith.constant 8.000000e+00 : f32
      %193 = arith.divf %192, %cst_55 : f32
      %c2_56 = arith.constant 2 : index
      %194 = memref.load %arg4[%c2_56] : memref<3xf32, #tpu.memory_space<smem>>
      %cst_57 = arith.constant 1.000000e+00 : f32
      %195 = arith.maximumf %194, %cst_57 : f32
      %c1_58 = arith.constant 1 : index
      %196 = memref.load %arg4[%c1_58] : memref<3xf32, #tpu.memory_space<smem>>
      %197 = arith.divf %196, %195 : f32
      %198 = arith.addf %193, %197 : f32
      %cst_59 = arith.constant 1.000000e+00 : f32
      %199 = arith.mulf %cst_59, %198 : f32
      %c0_60 = arith.constant 0 : index
      %200 = memref.load %arg3[%c0_60] : memref<1xf32, #tpu.memory_space<smem>>
      memref.store %199, %arg3[%c0_60] : memref<1xf32, #tpu.memory_space<smem>>
    } else {
    }
    return
  }
  func.func @transform_0(%arg0: i32) -> i32 {
    %c0_i32 = arith.constant 0 : i32
    %c0_i32_0 = arith.constant 0 : i32
    return %c0_i32 : i32
  }
  func.func @transform_1(%arg0: i32) -> (i32, i32, i32) {
    %c0_i32 = arith.constant 0 : i32
    %c0_i32_0 = arith.constant 0 : i32
    %c0_i32_1 = arith.constant 0 : i32
    return %c0_i32, %arg0, %c0_i32_0 : i32, i32, i32
  }
  func.func @transform_2(%arg0: i32) -> i32 {
    %c0_i32 = arith.constant 0 : i32
    %c0_i32_0 = arith.constant 0 : i32
    return %c0_i32 : i32
  }
}

</mosaic_0001>

<llo_original>
// kernel: tpu_custom_call.1
$region0: #{tpu_custom_call.1}
  #allocation0 [shape = 'u32[]', space=smem, size = 0x4, offset = 0x4, fixed_abs, tag = 'smem constant byte address 0x4 - core index']
  #allocation1 [shape = 'u32[144,128]{1,0:T(1,128)}', space=vmem, size = 0x12000, scoped, tag = 'internal scratch']
  #allocation2 [shape = 'f32[3]{0:T(128)}', space=smem, size = 0x200, scoped, tag = 'scratch operand']
  #allocation3 [shape = 'f32[1]{0:T(128)S(6)}', space=smem, size = 0x200, scoped, tag = 'scoped memory for tpu_custom_call.1']
  %s0 = inlined_call_operand.<no memory space> [shape: f32[1], index: 0, kind: input, shape index: {}]
  %s1 = inlined_call_operand.hbm [shape: f32[12,8,128], index: 1, kind: input, shape index: {}]
  %s2 = inlined_call_operand.hbm [shape: f32[1], index: 2, kind: output, shape index: {}]
  %s3 = sld [smem:[#allocation0]]
  $region30: #{tpu_custom_call.1} parent=0
    _
  %s5 = ssub.s32 1, %s3
  %s6 = scalar_select 0, %s5, %s3
  %7 = sst [smem:[#allocation3]] %s0
  $region1: #{tpu_custom_call.1} parent=0
    #allocation4 [shape = 'u8[49152]{0}', space=vmem, size = 0xc000, scoped, tag = 'input window, operand 1, single buffered']
    #allocation5 [shape = 's32[1]{0}', space=sflag, size = 0x4, scoped, tag = 'scoped memory for tpu_custom_call.1']
    #allocation6 [shape = 's32[1]{0}', space=sflag, size = 0x4, scoped, tag = 'scoped memory for tpu_custom_call.1']
    #allocation7 [shape = 'u8[512]{0}', space=smem, size = 0x200, scoped, tag = 'output window, operand 0, single buffered']
    %8 = vsyncpa [#allocation5], 0
    %9 = vsyncpa [#allocation6], 0
    // Predicated region
    $region2: #{tpu_custom_call.1} parent=1 // pred_check
      _
    $region3: #{tpu_custom_call.1} parent=1 // pred_check_branch
      %11 = sbr.rel (0) target = $region5
    $region4: #{tpu_custom_call.1} parent=1 // pred_region
      _
    $region5: #{tpu_custom_call.1} parent=1 // pred_fallthru
      _
    // Predicated region
    $region6: #{tpu_custom_call.1} parent=1 // pred_check
      _
    $region7: #{tpu_custom_call.1} parent=1 // pred_check_branch
      %13 = sbr.rel (0) target = $region9
    $region8: #{tpu_custom_call.1} parent=1 // pred_region
      %s15 = ssub.s32 1536, 1536
      %16 = vsyncadd [#allocation5], %s15
      %s17 = sshll.u32 [#allocation4], 4
      %s18 = int_to_ptr.vmem [resolvable:$true] %s17
      %23 = dma.hbm_to_vmem [thread:$0]  %s1, 1536, %s18, [#allocation5], 128, 128, 8
    $region9: #{tpu_custom_call.1} parent=1 // pred_fallthru
      _
    // Predicated region
    $region10: #{tpu_custom_call.1} parent=1 // pred_check
      _
    $region11: #{tpu_custom_call.1} parent=1 // pred_check_branch
      %25 = sbr.rel (0) target = $region13
    $region12: #{tpu_custom_call.1} parent=1 // pred_region
      %26 = dma.done [#allocation5], 1536
    $region13: #{tpu_custom_call.1} parent=1 // pred_fallthru
      _
    %p27 = scmp.eq.s32.totalorder 0, 0
    // Predicated region
    $region14: #{tpu_custom_call.1} parent=1 // pred_check
      %p28 = pneg %p27
    $region15: #{tpu_custom_call.1} parent=1 // pred_check_branch
      %30 = sbr.rel (%p28) target = $region17
    $region16: #{tpu_custom_call.1} parent=1 // pred_region
      %s31 = scalar_lea.smem [#allocation2], 0
      %32 = sst [smem:[%s31]] 0.0
      %s33 = scalar_lea.smem [#allocation2], 1
      %34 = sst [smem:[%s33]] 0.0
      %s35 = scalar_lea.smem [#allocation2], 2
      %36 = sst [smem:[%s35]] 0.0
    $region17: #{tpu_custom_call.1} parent=1 // pred_fallthru
      _
    %s37 = sld [smem:[#allocation3]]
    %v38 = vld [vmem:[#allocation4] sm:$0xff]
    %s39 = scalar_lea.vmem [#allocation4], 8
    %v40 = vld [vmem:[%s39] sm:$0xff]
    %s41 = scalar_lea.vmem [#allocation4], 16
    %v42 = vld [vmem:[%s41] sm:$0xff]
    %s43 = scalar_lea.vmem [#allocation4], 24
    %v44 = vld [vmem:[%s43] sm:$0xff]
    %s45 = scalar_lea.vmem [#allocation4], 32
    %v46 = vld [vmem:[%s45] sm:$0xff]
    %s47 = scalar_lea.vmem [#allocation4], 40
    %v48 = vld [vmem:[%s47] sm:$0xff]
    %s49 = scalar_lea.vmem [#allocation4], 48
    %v50 = vld [vmem:[%s49] sm:$0xff]
    %s51 = scalar_lea.vmem [#allocation4], 56
    %v52 = vld [vmem:[%s51] sm:$0xff]
    %s53 = scalar_lea.vmem [#allocation4], 64
    %v54 = vld [vmem:[%s53] sm:$0xff]
    %s55 = scalar_lea.vmem [#allocation4], 72
    %v56 = vld [vmem:[%s55] sm:$0xff]
    %s57 = scalar_lea.vmem [#allocation4], 80
    %v58 = vld [vmem:[%s57] sm:$0xff]
    %s59 = scalar_lea.vmem [#allocation4], 88
    %v60 = vld [vmem:[%s59] sm:$0xff]
    %v61 = vstv %s37
    %v62 = vand.u32 2147483647, %v61
    %vm63 = vcmp.le.f32.partialorder %v62, 0.7853982
    %vm64 = vcmp.lt.s32.totalorder %v61, 0
    %v65 = vand.u32 %v61, 2139095040
    %v66 = vshrl.u32 %v65, 23
    %v67 = vsub.s32 %v66, 127
    %v68 = vand.u32 2147483647, %v61
    %v69 = vand.u32 %v68, 8388607
    %v70 = vor.u32 %v69, 8388608
    %v71 = vsub.s32 0, %v70
    %v72 = vadd.s32 %v67, 1
    %vm73 = vcmp.gt.s32.totalorder %v72, 0
    %v74 = vsel %vm73, %v72, 0
    %v75 = vshrl.u32 %v74, 5
    %v76 = vand.u32 %v74, 31
    %v77 = vsub.s32 32, %v76
    %v78 = vshrl.u32 683565275, %v77
    %v79 = vshll.u32 683565275, %v76
    %v80 = vshrl.u32 2475754826, %v77
    %v81 = vor.u32 %v79, %v80
    %v82 = vshll.u32 2475754826, %v76
    %v83 = vshrl.u32 2131351028, %v77
    %v84 = vor.u32 %v82, %v83
    %v85 = vshll.u32 2131351028, %v76
    %v86 = vshrl.u32 2102212464, %v77
    %v87 = vor.u32 %v85, %v86
    %v88 = vshll.u32 2102212464, %v76
    %v89 = vshrl.u32 920167782, %v77
    %v90 = vor.u32 %v88, %v89
    %v91 = vshll.u32 920167782, %v76
    %v92 = vshrl.u32 1326507024, %v77
    %v93 = vor.u32 %v91, %v92
    %vm94 = vcmp.lt.s32.totalorder %v75, 1
    %vm95 = vcmp.lt.s32.totalorder %v75, 2
    %vm96 = vcmp.lt.s32.totalorder %v75, 3
    %vm97 = vcmp.lt.s32.totalorder %v75, 4
    %v98 = vsel %vm94, %v78, %v81
    %v99 = vsel %vm97, %v87, 2102212464
    %v100 = vsel %vm96, %v84, %v99
    %v101 = vsel %vm95, %v98, %v100
    %v102 = vsel %vm94, %v81, %v84
    %v103 = vsel %vm97, %v90, 920167782
    %v104 = vsel %vm96, %v87, %v103
    %v105 = vsel %vm95, %v102, %v104
    %v106 = vsel %vm94, %v84, %v87
    %v107 = vsel %vm97, %v93, 1326507024
    %v108 = vsel %vm96, %v90, %v107
    %v109 = vsel %vm95, %v106, %v108
    %v110 = vshll.u32 %v70, 8
    %v111 = vmul.u32.u64.compose %v110, %v109
    %v112 = vextract.low.u32 %v111
    %v113 = vextract.high.u32 %v111
    %v114 = vmul.u32.u64.compose %v110, %v105
    %v115 = vextract.low.u32 %v114
    %v116 = vextract.high.u32 %v114
    %v117 = vmul.u32 %v110, %v101
    %v118 = vadd.s32 %v113, %v115
    %vm119 = vc.u32 %v113, %v115
    %v120 = vadd.s32 %v116, 1
    %v121 = vsel %vm119, %v120, %v116
    %v122 = vadd.s32 %v117, %v121
    %v123 = vadd.s32 %v122, 536870912
    %v124 = vshrl.u32 %v123, 30
    %v125 = vshll.u32 %v124, 30
    %v126 = vsub.s32 %v122, %v125
    %vm127 = vcmp.lt.s32.totalorder %v126, 0
    %v128 = vsub.s32 0, %v126
    %v129 = vsel %vm127, %v128, %v126
    %v130 = vclz %v129
    %v131 = vsub.s32 %v130, 2
    %vm132 = vcmp.gt.s32.totalorder 0, %v131
    %v133 = vsel %vm132, 0, %v131
    %v134 = vsub.s32 32, %v133
    %v135 = vshll.u32 %v126, %v133
    %v136 = vshrl.u32 %v118, %v134
    %v137 = vor.u32 %v135, %v136
    %v138 = vsub.s32 4294967266, %v133
    %v139 = vadd.s32 %v138, 127
    %v140 = vshll.u32 %v139, 23
    %v141 = vor.u32 4788187, %v140
    %v142 = vand.u32 2147483647, %v141
    %v144 = vcvt.s32.f32 %v137
    %v145 = vmul.f32 %v144, %v142
    %v146 = vxor.u32 %v145, 2147483648
    %v147 = vsel %vm64, %v146, %v145
    %v148 = vsub.s32 4, %v124
    %v149 = vsel %vm64, %v148, %v124
    %v150 = vsel %vm63, %v61, %v147
    %v151 = vsel %vm63, 0, %v149
    %v152 = vcosq.f32.pop %v150
    %v153 = vsinq.f32.pop %v150
    %vm154 = vweird.f32 %v61
    %v155 = vand.u32 %v151, 3
    %vm156 = vcmp.lt.s32.totalorder %v155, 2
    %vm157 = vcmp.eq.s32.totalorder %v155, 0
    %v158 = vxor.u32 %v153, 2147483648
    %v159 = vsel %vm157, %v152, %v158
    %vm160 = vcmp.eq.s32.totalorder %v155, 2
    %v161 = vxor.u32 %v152, 2147483648
    %v162 = vsel %vm160, %v161, %v153
    %v163 = vsel %vm156, %v159, %v162
    %v164 = vsel %vm154, nan, %v163
    %s165 = vtos %v164
    %v166 = vstv %s37
    %v167 = vand.u32 2147483647, %v166
    %vm168 = vcmp.le.f32.partialorder %v167, 0.7853982
    %vm169 = vcmp.lt.s32.totalorder %v166, 0
    %v170 = vand.u32 %v166, 2139095040
    %v171 = vshrl.u32 %v170, 23
    %v172 = vsub.s32 %v171, 127
    %v173 = vand.u32 2147483647, %v166
    %v174 = vand.u32 %v173, 8388607
    %v175 = vor.u32 %v174, 8388608
    %v176 = vsub.s32 0, %v175
    %v177 = vadd.s32 %v172, 1
    %vm178 = vcmp.gt.s32.totalorder %v177, 0
    %v179 = vsel %vm178, %v177, 0
    %v180 = vshrl.u32 %v179, 5
    %v181 = vand.u32 %v179, 31
    %v182 = vsub.s32 32, %v181
    %v183 = vshrl.u32 683565275, %v182
    %v184 = vshll.u32 683565275, %v181
    %v185 = vshrl.u32 2475754826, %v182
    %v186 = vor.u32 %v184, %v185
    %v187 = vshll.u32 2475754826, %v181
    %v188 = vshrl.u32 2131351028, %v182
    %v189 = vor.u32 %v187, %v188
    %v190 = vshll.u32 2131351028, %v181
    %v191 = vshrl.u32 2102212464, %v182
    %v192 = vor.u32 %v190, %v191
    %v193 = vshll.u32 2102212464, %v181
    %v194 = vshrl.u32 920167782, %v182
    %v195 = vor.u32 %v193, %v194
    %v196 = vshll.u32 920167782, %v181
    %v197 = vshrl.u32 1326507024, %v182
    %v198 = vor.u32 %v196, %v197
    %vm199 = vcmp.lt.s32.totalorder %v180, 1
    %vm200 = vcmp.lt.s32.totalorder %v180, 2
    %vm201 = vcmp.lt.s32.totalorder %v180, 3
    %vm202 = vcmp.lt.s32.totalorder %v180, 4
    %v203 = vsel %vm199, %v183, %v186
    %v204 = vsel %vm202, %v192, 2102212464
    %v205 = vsel %vm201, %v189, %v204
    %v206 = vsel %vm200, %v203, %v205
    %v207 = vsel %vm199, %v186, %v189
    %v208 = vsel %vm202, %v195, 920167782
    %v209 = vsel %vm201, %v192, %v208
    %v210 = vsel %vm200, %v207, %v209
    %v211 = vsel %vm199, %v189, %v192
    %v212 = vsel %vm202, %v198, 1326507024
    %v213 = vsel %vm201, %v195, %v212
    %v214 = vsel %vm200, %v211, %v213
    %v215 = vshll.u32 %v175, 8
    %v216 = vmul.u32.u64.compose %v215, %v214
    %v217 = vextract.low.u32 %v216
    %v218 = vextract.high.u32 %v216
    %v219 = vmul.u32.u64.compose %v215, %v210
    %v220 = vextract.low.u32 %v219
    %v221 = vextract.high.u32 %v219
    %v222 = vmul.u32 %v215, %v206
    %v223 = vadd.s32 %v218, %v220
    %vm224 = vc.u32 %v218, %v220
    %v225 = vadd.s32 %v221, 1
    %v226 = vsel %vm224, %v225, %v221
    %v227 = vadd.s32 %v222, %v226
    %v228 = vadd.s32 %v227, 536870912
    %v229 = vshrl.u32 %v228, 30
    %v230 = vshll.u32 %v229, 30
    %v231 = vsub.s32 %v227, %v230
    %vm232 = vcmp.lt.s32.totalorder %v231, 0
    %v233 = vsub.s32 0, %v231
    %v234 = vsel %vm232, %v233, %v231
    %v235 = vclz %v234
    %v236 = vsub.s32 %v235, 2
    %vm237 = vcmp.gt.s32.totalorder 0, %v236
    %v238 = vsel %vm237, 0, %v236
    %v239 = vsub.s32 32, %v238
    %v240 = vshll.u32 %v231, %v238
    %v241 = vshrl.u32 %v223, %v239
    %v242 = vor.u32 %v240, %v241
    %v243 = vsub.s32 4294967266, %v238
    %v244 = vadd.s32 %v243, 127
    %v245 = vshll.u32 %v244, 23
    %v246 = vor.u32 4788187, %v245
    %v247 = vand.u32 2147483647, %v246
    %v249 = vcvt.s32.f32 %v242
    %v250 = vmul.f32 %v249, %v247
    %v251 = vxor.u32 %v250, 2147483648
    %v252 = vsel %vm169, %v251, %v250
    %v253 = vsub.s32 4, %v229
    %v254 = vsel %vm169, %v253, %v229
    %v255 = vsel %vm168, %v166, %v252
    %v256 = vsel %vm168, 0, %v254
    %v257 = vcosq.f32.pop %v255
    %v258 = vsinq.f32.pop %v255
    %vm259 = vweird.f32 %v166
    %v260 = vadd.s32 %v256, 3
    %v261 = vand.u32 %v260, 3
    %vm262 = vcmp.lt.s32.totalorder %v261, 2
    %vm263 = vcmp.eq.s32.totalorder %v261, 0
    %v264 = vxor.u32 %v258, 2147483648
    %v265 = vsel %vm263, %v257, %v264
    %vm266 = vcmp.eq.s32.totalorder %v261, 2
    %v267 = vxor.u32 %v257, 2147483648
    %v268 = vsel %vm266, %v267, %v258
    %v269 = vsel %vm262, %v265, %v268
    %v270 = vsel %vm259, nan, %v269
    %s271 = vtos %v270
    %v272 = vstv %s165
    %v273 = vmul.f32 %v272, %v38
    %v274 = vstv %s271
    %v275 = vmul.f32 %v274, %v42
    %v276 = vsub.f32 %v273, %v275
    %v277 = vmul.f32 %v272, %v40
    %v278 = vmul.f32 %v274, %v44
    %v279 = vsub.f32 %v277, %v278
    %v280 = vmul.f32 %v274, %v38
    %v281 = vmul.f32 %v272, %v42
    %v282 = vadd.f32 %v280, %v281
    %v283 = vmul.f32 %v274, %v40
    %v284 = vmul.f32 %v272, %v44
    %v285 = vadd.f32 %v283, %v284
    %v286 = vmul.f32 %v276, %v272
    %v287 = vmul.f32 %v279, %v274
    %v288 = vsub.f32 %v286, %v287
    %v289 = vmul.f32 %v276, %v274
    %v290 = vmul.f32 %v279, %v272
    %v291 = vadd.f32 %v289, %v290
    %v292 = vmul.f32 %v282, %v272
    %v293 = vmul.f32 %v285, %v274
    %v294 = vsub.f32 %v292, %v293
    %v295 = vmul.f32 %v282, %v274
    %v296 = vmul.f32 %v285, %v272
    %v297 = vadd.f32 %v295, %v296
    %v298 = vsub.f32 %v56, %v54
    %v299 = vstv %s37
    %v300 = vsub.f32 %v298, %v299
    %v301 = vmul.f32 %v288, %v288
    %v302 = vmul.f32 %v291, %v294
    %v303 = vadd.f32 %v301, %v302
    %v304 = vmul.f32 %v288, %v291
    %v305 = vmul.f32 %v291, %v297
    %v306 = vadd.f32 %v304, %v305
    %v307 = vmul.f32 %v294, %v288
    %v308 = vmul.f32 %v297, %v294
    %v309 = vadd.f32 %v307, %v308
    %v310 = vmul.f32 %v297, %v297
    %v311 = vadd.f32 %v302, %v310
    %v312 = vmul.f32 %v46, %v46
    %v313 = vmul.f32 %v48, %v50
    %v314 = vadd.f32 %v312, %v313
    %v315 = vmul.f32 %v46, %v48
    %v316 = vmul.f32 %v48, %v52
    %v317 = vadd.f32 %v315, %v316
    %v318 = vmul.f32 %v50, %v46
    %v319 = vmul.f32 %v52, %v50
    %v320 = vadd.f32 %v318, %v319
    %v321 = vmul.f32 %v52, %v52
    %v322 = vadd.f32 %v313, %v321
    %v323 = vadd.f32 %v303, %v311
    %v324 = vadd.f32 %v323, %v314
    %v325 = vadd.f32 %v324, %v322
    %v326 = vmul.f32 %v303, %v314
    %v327 = vmul.f32 %v306, %v320
    %v328 = vadd.f32 %v326, %v327
    %v329 = vmul.f32 %v309, %v317
    %v330 = vadd.f32 %v328, %v329
    %v331 = vmul.f32 %v311, %v322
    %v332 = vadd.f32 %v330, %v331
    %v333 = vmul.f32 %v303, %v311
    %v334 = vmul.f32 %v306, %v309
    %v335 = vsub.f32 %v333, %v334
    %v336 = vmul.f32 %v314, %v322
    %v337 = vmul.f32 %v317, %v320
    %v338 = vsub.f32 %v336, %v337
    %v339 = vmul.f32 %v335, %v338
    %v340 = vmax.f32 %v339, 1e-07
    %v341 = vrsqrt.pop %v340
    %v342 = vmul.f32 %v340, %v341
    %vm343 = vcmp.eq.f32.partialorder %v340, inf
    %v344 = vsel %vm343, %v340, %v342
    %vm345 = vcmp.eq.f32.partialorder %v340, 0.0
    %v346 = vand.u32 %v340, 2147483648
    %v347 = vsel %vm345, %v346, %v344
    %v348 = vmul.f32 %v347, 2.0
    %v349 = vadd.f32 %v332, %v348
    %v350 = vmax.f32 %v349, 1e-07
    %v351 = vrsqrt.pop %v350
    %v352 = vmul.f32 %v350, %v351
    %vm353 = vcmp.eq.f32.partialorder %v350, inf
    %v354 = vsel %vm353, %v350, %v352
    %vm355 = vcmp.eq.f32.partialorder %v350, 0.0
    %v356 = vand.u32 %v350, 2147483648
    %v357 = vsel %vm355, %v356, %v354
    %v358 = vmul.f32 %v357, 2.0
    %v359 = vsub.f32 %v325, %v358
    %v360 = vmax.f32 %v359, 1e-07
    %v361 = vrsqrt.pop %v360
    %v362 = vmul.f32 %v360, %v361
    %vm363 = vcmp.eq.f32.partialorder %v360, inf
    %v364 = vsel %vm363, %v360, %v362
    %vm365 = vcmp.eq.f32.partialorder %v360, 0.0
    %v366 = vand.u32 %v360, 2147483648
    %v367 = vsel %vm365, %v366, %v364
    %v368 = vmax.f32 %v347, 1e-07
    %v369 = vrsqrt.pop %v368
    %v370 = vmul.f32 %v368, %v369
    %vm371 = vcmp.eq.f32.partialorder %v368, inf
    %v372 = vsel %vm371, %v368, %v370
    %vm373 = vcmp.eq.f32.partialorder %v368, 0.0
    %v374 = vand.u32 %v368, 2147483648
    %v375 = vsel %vm373, %v374, %v372
    %v376 = vmax.f32 %v375, 1e-07
    %v377 = vrsqrt.pop %v376
    %v378 = vmul.f32 %v376, %v377
    %vm379 = vcmp.eq.f32.partialorder %v376, inf
    %v380 = vsel %vm379, %v376, %v378
    %vm381 = vcmp.eq.f32.partialorder %v376, 0.0
    %v382 = vand.u32 %v376, 2147483648
    %v383 = vsel %vm381, %v382, %v380
    %v384 = vmax.f32 %v383, 1e-07
    %v385 = vmul.f32 %v384, 2.0
    %v386 = vrcp.pop %v385
    %v387 = vmul.f32 %v367, %v386
    %v388 = vadd.f32 %v387, 1.0
    %v389 = vlog2.pop %v388
    %v390 = vmul.f32 %v389, 0.6931472
    %v391 = vmul.f32 -0.5, %v387
    %v392 = vadd.f32 %v391, 1.0
    %v393 = vmul.f32 %v392, %v387
    %v394 = vand.u32 2147483647, %v387
    %vm395 = vcmp.lt.f32.partialorder %v394, 0.0004427343
    %v396 = vsel %vm395, %v393, %v390
    %v397 = vadd.f32 %v396, 1.0
    %v398 = vrcp.pop %v397
    %v399 = vsub.f32 1.0, %v398
    %v400 = vadd.f32 %v300, 1.5707964
    %v401 = vmul.f32 %v400, 0.31830987
    %v402 = vfloor.f32 %v401
    %v403 = vmul.f32 %v402, 3.1415927
    %v404 = vsub.f32 %v400, %v403
    %v405 = vsub.f32 %v404, 1.5707964
    %v406 = vand.u32 2147483647, %v405
    %vm407 = vcmp.lt.f32.partialorder %v406, 0.1
    %v408 = vmul.f32 %v406, 5.0
    %v409 = vmul.f32 %v408, %v406
    %v410 = vsub.f32 %v406, 0.05
    %v411 = vsel %vm407, %v409, %v410
    %s412 = sld [smem:[#allocation2]]
    %v413 = vmul.f32 %v399, %v60
    %414 = vadd.xlane.f32.xlu0 %v413
    %v415 = vpop.xlane.xlu0 %414
    %v416 = vrot.slane %v415, 4
    %v417 = vadd.f32 %v415, %v416
    %v418 = vrot.slane %v417, 2
    %v419 = vadd.f32 %v417, %v418
    %v420 = vrot.slane %v419, 1
    %v421 = vadd.f32 %v419, %v420
    %s422 = vtos %v421
    %s423 = sadd.f32 %s412, %s422
    %s424 = scalar_lea.smem [#allocation2], 0
    %425 = sst [smem:[%s424]] %s423
    %s426 = sld [smem:[#allocation2 + $0x1]]
    %v427 = vmul.f32 %v411, %v58
    %428 = vadd.xlane.f32.xlu0 %v427
    %v429 = vpop.xlane.xlu0 %428
    %v430 = vrot.slane %v429, 4
    %v431 = vadd.f32 %v429, %v430
    %v432 = vrot.slane %v431, 2
    %v433 = vadd.f32 %v431, %v432
    %v434 = vrot.slane %v433, 1
    %v435 = vadd.f32 %v433, %v434
    %s436 = vtos %v435
    %s437 = sadd.f32 %s426, %s436
    %s438 = scalar_lea.smem [#allocation2], 1
    %439 = sst [smem:[%s438]] %s437
    %s440 = sld [smem:[#allocation2 + $0x2]]
    %441 = vadd.xlane.f32.xlu0 %v58
    %v442 = vpop.xlane.xlu0 %441
    %v443 = vrot.slane %v442, 4
    %v444 = vadd.f32 %v442, %v443
    %v445 = vrot.slane %v444, 2
    %v446 = vadd.f32 %v444, %v445
    %v447 = vrot.slane %v446, 1
    %v448 = vadd.f32 %v446, %v447
    %s449 = vtos %v448
    %s450 = sadd.f32 %s440, %s449
    %s451 = scalar_lea.smem [#allocation2], 2
    %452 = sst [smem:[%s451]] %s450
    // Predicated region
    $region18: #{tpu_custom_call.1} parent=1 // pred_check
      %p453 = pneg %p27
    $region19: #{tpu_custom_call.1} parent=1 // pred_check_branch
      %455 = sbr.rel (%p453) target = $region21
    $region20: #{tpu_custom_call.1} parent=1 // pred_region
      %s456 = sld [smem:[#allocation2]]
      %v457 = vrcp.pop 8.0
      %s458 = vtos %v457
      %s459 = smul.f32 %s456, %s458
      %s460 = sld [smem:[#allocation2 + $0x2]]
      %s461 = smax.f32 %s460, 1.0
      %s462 = sld [smem:[#allocation2 + $0x1]]
      %v463 = vstv %s461
      %v464 = vrcp.pop %v463
      %s465 = vtos %v464
      %s466 = smul.f32 %s462, %s465
      %s467 = sadd.f32 %s459, %s466
      %s468 = scalar_lea.smem [#allocation7], 0
      %469 = sst [smem:[%s468]] %s467
    $region21: #{tpu_custom_call.1} parent=1 // pred_fallthru
      _
    // Predicated region
    $region22: #{tpu_custom_call.1} parent=1 // pred_check
      _
    $region23: #{tpu_custom_call.1} parent=1 // pred_check_branch
      %471 = sbr.rel (0) target = $region25
    $region24: #{tpu_custom_call.1} parent=1 // pred_region
      %s473 = ssub.s32 16, 16
      %474 = vsyncadd [#allocation6], %s473
      %477 = dma.smem_to_hbm [#allocation7], 16, %s2, [#allocation6]
    $region25: #{tpu_custom_call.1} parent=1 // pred_fallthru
      _
    // Predicated region
    $region26: #{tpu_custom_call.1} parent=1 // pred_check
      _
    $region27: #{tpu_custom_call.1} parent=1 // pred_check_branch
      %479 = sbr.rel (0) target = $region29
    $region28: #{tpu_custom_call.1} parent=1 // pred_region
      %480 = dma.done [#allocation6], 16
    $region29: #{tpu_custom_call.1} parent=1 // pred_fallthru
      _
    %481 = sfence
    %482 = vsyncpa [#allocation5], 1
    %483 = vsyncpa [#allocation6], 1

</llo_original>
